<compile_context>
chip_gen: v5e
topology: v5e:2x2
jax: 0.10.0
libtpu: 0.0.40
codegen_flags: <defaults>
</compile_context>

<pallas_src>
import math
import functools

import jax
import jax.numpy as jnp
from jax.experimental import pallas as pl
from jax.experimental.pallas import tpu as pltpu

_LANE = 128
_MAX_TILE_ROWS = 2048  # 2048 x 128 x 4B = 1 MiB per f32 buffer; with in+out
                       # double-buffered that is ~4 MiB, well under scoped VMEM.


def _sublane_granule(dtype) -> int:
    # Sub-32-bit dtypes pack along sublanes: f32 -> 8, bf16 -> 16, int8 -> 32.
    itemsize = jnp.dtype(dtype).itemsize
    return max(8, 32 // max(1, itemsize))


def _scaled_leaky_relu_kernel(x_ref, o_ref, *, pos_gain, neg_gain):
    x = x_ref[...]
    pos = jnp.asarray(pos_gain, dtype=x.dtype)
    neg = jnp.asarray(neg_gain, dtype=x.dtype)
    # compare + select + mul: sqrt(2) and negative_slope folded into the gains.
    o_ref[...] = x * jnp.where(x >= 0, pos, neg)


def scaled_leaky_relu(x, negative_slope=0.2):
    """Equivalent of F.leaky_relu(x, negative_slope) * sqrt(2)."""
    orig_shape = x.shape
    dtype = x.dtype
    gain = math.sqrt(2.0)

    flat = x.reshape(-1)
    total = flat.shape[0]

    sublane = _sublane_granule(dtype)

    # Lane-dense layout: rows of 128 elements; row tile is a multiple of the
    # sublane granule, capped so buffers stay comfortably inside VMEM.
    rows_needed = pl.cdiv(total, _LANE)
    tile_rows = min(_MAX_TILE_ROWS,
                    max(sublane, pl.cdiv(rows_needed, sublane) * sublane))
    n_blocks = pl.cdiv(rows_needed, tile_rows)
    padded_rows = n_blocks * tile_rows
    pad = padded_rows * _LANE - total
    if pad:
        flat = jnp.pad(flat, (0, pad))
    x2d = flat.reshape(padded_rows, _LANE)

    kernel = functools.partial(
        _scaled_leaky_relu_kernel,
        pos_gain=gain,
        neg_gain=negative_slope * gain,
    )

    out2d = pl.pallas_call(
        kernel,
        out_shape=jax.ShapeDtypeStruct((padded_rows, _LANE), dtype),
        grid=(n_blocks,),
        in_specs=[pl.BlockSpec((tile_rows, _LANE), lambda i: (i, 0))],
        out_specs=pl.BlockSpec((tile_rows, _LANE), lambda i: (i, 0)),
        compiler_params=pltpu.CompilerParams(
            dimension_semantics=("parallel",)),
    )(x2d)

    out = out2d.reshape(-1)
    if pad:
        out = out[:total]
    return out.reshape(orig_shape)


if __name__ == "__main__":
    key = jax.random.PRNGKey(0)

    # Small NCHW input consistent with the module's usage in MobileStyleGAN.
    x = jax.random.normal(key, (2, 4, 16, 16), dtype=jnp.float32)

    negative_slope = 0.2
    out = scaled_leaky_relu(x, negative_slope=negative_slope)
    out = jax.block_until_ready(out)

    # Reference (same semantics as F.leaky_relu(x, 0.2) * sqrt(2)).
    ref = jnp.where(x >= 0, x, negative_slope * x) * math.sqrt(2.0)

    assert out.shape == ref.shape == (2, 4, 16, 16)
    assert out.dtype == x.dtype
    assert jnp.allclose(out, ref, atol=1e-6, rtol=1e-6), "mismatch vs reference"

    print("KERNEL_OK")
</pallas_src>

<mosaic_0001>
module attributes {stable_mosaic.version = 11 : i64} {
  func.func @_scaled_leaky_relu_kernel(%arg0: i32, %arg1: memref<16x128xf32, #tpu.memory_space<vmem>>, %arg2: memref<16x128xf32, #tpu.memory_space<vmem>>) attributes {dimension_semantics = [#tpu.dimension_semantics<parallel>], iteration_bounds = array<i64: 1>, scalar_prefetch = 0 : i64, scratch_operands = 0 : i64, tpu.core_type = #tpu.core_type<tc>, window_params = [{transform_indices = @transform_0, window_bounds = array<i64: 16, 128>}, {transform_indices = @transform_1, window_bounds = array<i64: 16, 128>}]} {
    %c0 = arith.constant 0 : index
    %c0_0 = arith.constant 0 : index
    %0 = vector.load %arg1[%c0, %c0_0] : memref<16x128xf32, #tpu.memory_space<vmem>>, vector<16x128xf32>
    %cst = arith.constant 0.000000e+00 : f32
    %1 = vector.broadcast %cst : f32 to vector<16x128xf32>
    %2 = arith.cmpf oge, %0, %1 : vector<16x128xf32>
    %cst_1 = arith.constant 1.41421354 : f32
    %cst_2 = arith.constant 0.282842726 : f32
    %3 = vector.broadcast %cst_1 : f32 to vector<16x128xf32>
    %4 = vector.broadcast %cst_2 : f32 to vector<16x128xf32>
    %5 = arith.select %2, %3, %4 : vector<16x128xi1>, vector<16x128xf32>
    %6 = arith.mulf %0, %5 : vector<16x128xf32>
    %c0_3 = arith.constant 0 : index
    %c0_4 = arith.constant 0 : index
    %7 = vector.load %arg2[%c0_3, %c0_4] : memref<16x128xf32, #tpu.memory_space<vmem>>, vector<16x128xf32>
    tpu.vector_store %arg2[%c0_3, %c0_4], %6 {strides = array<i32>} : memref<16x128xf32, #tpu.memory_space<vmem>>, vector<16x128xf32>,
    return
  }
  func.func @transform_0(%arg0: i32) -> (i32, i32) {
    %c0_i32 = arith.constant 0 : i32
    %c0_i32_0 = arith.constant 0 : i32
    return %arg0, %c0_i32 : i32, i32
  }
  func.func @transform_1(%arg0: i32) -> (i32, i32) {
    %c0_i32 = arith.constant 0 : i32
    %c0_i32_0 = arith.constant 0 : i32
    return %arg0, %c0_i32 : i32, i32
  }
}

</mosaic_0001>

<llo_original>
// kernel: tpu_custom_call.1
$region0: #{tpu_custom_call.1}
  #allocation0 [shape = 'u32[]', space=smem, size = 0x4, offset = 0x4, fixed_abs, tag = 'smem constant byte address 0x4 - core index']
  #allocation1 [shape = 'u32[72,128]{1,0:T(1,128)}', space=vmem, size = 0x9000, scoped, tag = 'internal scratch']
  %s0 = inlined_call_operand.hbm [shape: f32[16,128], index: 0, kind: input, shape index: {}]
  %s1 = inlined_call_operand.hbm [shape: f32[16,128], index: 1, kind: output, shape index: {}]
  %s2 = sld [smem:[#allocation0]]
  $region18: #{tpu_custom_call.1} parent=0
    _
  %s4 = ssub.s32 1, %s2
  %s5 = scalar_select 0, %s4, %s2
  $region1: #{tpu_custom_call.1} parent=0
    #allocation2 [shape = 'u8[8192]{0}', space=vmem, size = 0x2000, scoped, tag = 'input window, operand 0, single buffered']
    #allocation3 [shape = 's32[1]{0}', space=sflag, size = 0x4, scoped, tag = 'scoped memory for tpu_custom_call.1']
    #allocation4 [shape = 's32[1]{0}', space=sflag, size = 0x4, scoped, tag = 'scoped memory for tpu_custom_call.1']
    #allocation5 [shape = 'u8[8192]{0}', space=vmem, size = 0x2000, scoped, tag = 'output window, operand 0, single buffered']
    %6 = vsyncpa [#allocation3], 0
    %7 = vsyncpa [#allocation4], 0
    // Predicated region
    $region2: #{tpu_custom_call.1} parent=1 // pred_check
      _
    $region3: #{tpu_custom_call.1} parent=1 // pred_check_branch
      %9 = sbr.rel (0) target = $region5
    $region4: #{tpu_custom_call.1} parent=1 // pred_region
      %11 = vsyncadd [#allocation3], 0
      %s12 = sshll.u32 %s0, 4
      %s13 = int_to_ptr.hbm [resolvable:$true] %s12
      %s14 = sshll.u32 [#allocation2], 4
      %s15 = int_to_ptr.vmem [resolvable:$true] %s14
      %20 = dma.hbm_to_vmem [thread:$0]  %s13, 256, %s15, [#allocation3], 128, 128, 8
    $region5: #{tpu_custom_call.1} parent=1 // pred_fallthru
      _
    // Predicated region
    $region6: #{tpu_custom_call.1} parent=1 // pred_check
      _
    $region7: #{tpu_custom_call.1} parent=1 // pred_check_branch
      %22 = sbr.rel (0) target = $region9
    $region8: #{tpu_custom_call.1} parent=1 // pred_region
      %24 = dma.done [#allocation3], 256
    $region9: #{tpu_custom_call.1} parent=1 // pred_fallthru
      _
    %v25 = vld [vmem:[#allocation2] sm:$0xff]
    %v26 = vld [vmem:[#allocation2 + $0x8] sm:$0xff]
    %vm27 = vcmp.ge.f32.partialorder %v25, 0.0
    %vm28 = vcmp.ge.f32.partialorder %v26, 0.0
    %v29 = vsel %vm27, 1.4142135, 0.28284273
    %v30 = vsel %vm28, 1.4142135, 0.28284273
    %v31 = vmul.f32 %v25, %v29
    %v32 = vmul.f32 %v26, %v30
    %33 = vst [vmem:[#allocation5] sm:$0xff] %v31
    %34 = vst [vmem:[#allocation5 + $0x8] sm:$0xff] %v32
    // Predicated region
    $region10: #{tpu_custom_call.1} parent=1 // pred_check
      _
    $region11: #{tpu_custom_call.1} parent=1 // pred_check_branch
      %36 = sbr.rel (0) target = $region13
    $region12: #{tpu_custom_call.1} parent=1 // pred_region
      %38 = vsyncadd [#allocation4], 0
      %s39 = sshll.u32 [#allocation5], 4
      %s40 = int_to_ptr.vmem [resolvable:$true] %s39
      %s41 = sshll.u32 %s1, 4
      %s42 = int_to_ptr.hbm [resolvable:$true] %s41
      %47 = dma.vmem_to_hbm [thread:$0]  %s40, 256, %s42, [#allocation4], 128, 128, 8
    $region13: #{tpu_custom_call.1} parent=1 // pred_fallthru
      _
    // Predicated region
    $region14: #{tpu_custom_call.1} parent=1 // pred_check
      _
    $region15: #{tpu_custom_call.1} parent=1 // pred_check_branch
      %49 = sbr.rel (0) target = $region17
    $region16: #{tpu_custom_call.1} parent=1 // pred_region
      %51 = dma.done [#allocation4], 256
    $region17: #{tpu_custom_call.1} parent=1 // pred_fallthru
      _
    %52 = vsyncpa [#allocation3], 1
    %53 = vsyncpa [#allocation4], 1

</llo_original>
